<compile_context>
chip_gen: v7x
topology: tpu7x:2x2x1
jax: 0.10.0
libtpu: 0.0.40
codegen_flags: <defaults>
</compile_context>

<pallas_src>
import jax
import jax.numpy as jnp
from jax.experimental import pallas as pl
from jax.experimental.pallas import tpu as pltpu

# ----------------------------- toy Mistral-MLP config -----------------------------
HIDDEN = 256          # multiple of 128 -> lane-dense activations / stores
INTERMEDIATE = 512    # multiple of 256 -> full-depth MXU tiles, 2 grid steps on axis j
SEQ = 16              # number of tokens (single token block at toy dims)


# ----------------------------------- kernel ----------------------------------------
def mistral_mlp_kernel(x_ref, wg_ref, wu_ref, wd_ref, out_ref, acc_ref):
    # x_ref:   (block_s, H)        bf16   token block (constant across j)
    # wg_ref:  (H, block_i)        bf16   gate-proj column tile j
    # wu_ref:  (H, block_i)        bf16   up-proj   column tile j
    # wd_ref:  (block_i, H)        bf16   down-proj row tile j (reduction tile)
    # out_ref: (block_s, H)        bf16
    # acc_ref: (block_s, H)        f32    VMEM accumulator scratch
    j = pl.program_id(1)

    @pl.when(j == 0)
    def _init():
        acc_ref[...] = jnp.zeros_like(acc_ref)

    x = x_ref[...]  # bf16 operands straight onto the MXU, f32 accumulation.
    gate = jnp.dot(x, wg_ref[...], preferred_element_type=jnp.float32)
    up = jnp.dot(x, wu_ref[...], preferred_element_type=jnp.float32)

    # SiluAndMul on this intermediate tile only (full (S, 2I) never materialized).
    act = gate * jax.nn.sigmoid(gate) * up  # f32 on VPU/EUP (v5e-safe)

    # Partial down-projection for this reduction tile.
    acc_ref[...] += jnp.dot(act.astype(wd_ref.dtype), wd_ref[...],
                            preferred_element_type=jnp.float32)

    @pl.when(j == pl.num_programs(1) - 1)
    def _finalize():
        out_ref[...] = acc_ref[...].astype(out_ref.dtype)


# ----------------------------------- wrapper ----------------------------------------
def mistral_mlp(x, w_gate, w_up, w_down, *, block_s=None, block_i=None):
    """Fused MistralMLP forward.

    x:      (S, H)  bf16
    w_gate: (H, I)  bf16  (gate half of gate_up_proj, pre-transposed from [out, in])
    w_up:   (H, I)  bf16  (up   half of gate_up_proj, pre-transposed)
    w_down: (I, H)  bf16  (down_proj, pre-transposed)
    returns (S, H)  bf16
    """
    S, H = x.shape
    I = w_gate.shape[1]
    assert w_up.shape == (H, I) and w_down.shape == (I, H)

    # Token block: collapse the grid at small S; cap so the accumulator stays modest.
    if block_s is None:
        block_s = S if S <= 256 else 256
    # Intermediate tile: prefer 512 / 256-deep contractions (full MXU on v6e/v7x).
    if block_i is None:
        for cand in (512, 256, 128):
            if I % cand == 0:
                block_i = cand
                break
        else:
            block_i = I
    assert I % block_i == 0, "intermediate size must be a multiple of block_i"

    grid = (pl.cdiv(S, block_s), I // block_i)
    out_dtype = x.dtype

    # VMEM budget: double-buffered streamed tiles + activation / accumulator slabs.
    itm = jnp.dtype(jnp.bfloat16).itemsize
    need = (2 * block_s * H * itm            # x (double-buffered)
            + 2 * 2 * H * block_i * itm      # w_gate + w_up tiles
            + 2 * block_i * H * itm          # w_down tile
            + 2 * block_s * H * itm          # out
            + block_s * H * 4)               # f32 accumulator
    vmem_limit = max(32 << 20, min(2 * need + (4 << 20), 100 << 20))

    cost = pl.CostEstimate(
        flops=2 * S * H * (2 * I) + 2 * S * I * H,
        transcendentals=S * I,  # sigmoid per intermediate element
        bytes_accessed=(x.size + w_gate.size + w_up.size + w_down.size) * itm
                       + S * H * itm,
    )

    return pl.pallas_call(
        mistral_mlp_kernel,
        out_shape=jax.ShapeDtypeStruct((S, H), out_dtype),
        grid=grid,
        in_specs=[
            pl.BlockSpec((block_s, H), lambda i, j: (i, 0)),   # x: constant across j
            pl.BlockSpec((H, block_i), lambda i, j: (0, j)),   # gate columns, tile j
            pl.BlockSpec((H, block_i), lambda i, j: (0, j)),   # up   columns, tile j
            pl.BlockSpec((block_i, H), lambda i, j: (j, 0)),   # down rows,    tile j
        ],
        out_specs=pl.BlockSpec((block_s, H), lambda i, j: (i, 0)),
        scratch_shapes=[pltpu.VMEM((block_s, H), jnp.float32)],
        compiler_params=pltpu.CompilerParams(
            # token blocks are independent -> shard across v7x's 2 TCs;
            # intermediate axis is the down-proj reduction -> last, "arbitrary".
            dimension_semantics=("parallel", "arbitrary"),
            vmem_limit_bytes=int(vmem_limit),
        ),
        cost_estimate=cost,
    )(x, w_gate, w_up, w_down)


# ------------------------------------- main -----------------------------------------
if __name__ == "__main__":
    key = jax.random.PRNGKey(0)
    kx, kgu, kd = jax.random.split(key, 3)

    # Weights are the transpose of PyTorch nn.Linear's [out, in] layout so the
    # kernel computes x @ W directly on the MXU; stored bf16 (halves VMEM/DMA).
    x = (jax.random.normal(kx, (SEQ, HIDDEN), jnp.float32)).astype(jnp.bfloat16)
    w_gate_up = (jax.random.normal(kgu, (HIDDEN, 2 * INTERMEDIATE), jnp.float32)
                 * 0.02).astype(jnp.bfloat16)
    w_down = (jax.random.normal(kd, (INTERMEDIATE, HIDDEN), jnp.float32)
              * 0.02).astype(jnp.bfloat16)

    # Split the packed gate_up weight once in the wrapper layer (free, one-time).
    w_gate = w_gate_up[:, :INTERMEDIATE]
    w_up = w_gate_up[:, INTERMEDIATE:]

    out = mistral_mlp(x, w_gate, w_up, w_down)
    out = jax.block_until_ready(out)

    # Pure-JAX reference with identical (bf16 MXU operands, f32 accumulate) semantics.
    gu_ref = jnp.dot(x, w_gate_up, preferred_element_type=jnp.float32)
    gate_r, up_r = gu_ref[:, :INTERMEDIATE], gu_ref[:, INTERMEDIATE:]
    act_r = gate_r * jax.nn.sigmoid(gate_r) * up_r
    ref = jnp.dot(act_r.astype(jnp.bfloat16), w_down,
                  preferred_element_type=jnp.float32).astype(jnp.bfloat16)

    assert out.shape == (SEQ, HIDDEN) and out.dtype == jnp.bfloat16
    assert jnp.allclose(out.astype(jnp.float32), ref.astype(jnp.float32),
                        atol=3e-2, rtol=3e-2)
    print("KERNEL_OK")
</pallas_src>

<mosaic_0001>
module attributes {stable_mosaic.version = 11 : i64} {
  func.func @mistral_mlp_kernel(%arg0: i32, %arg1: i32, %arg2: memref<16x256xbf16, #tpu.memory_space<vmem>>, %arg3: memref<256x512xbf16, #tpu.memory_space<vmem>>, %arg4: memref<256x512xbf16, #tpu.memory_space<vmem>>, %arg5: memref<512x256xbf16, #tpu.memory_space<vmem>>, %arg6: memref<16x256xbf16, #tpu.memory_space<vmem>>, %arg7: memref<16x256xf32, #tpu.memory_space<vmem>>) attributes {dimension_semantics = [#tpu.dimension_semantics<parallel>, #tpu.dimension_semantics<arbitrary>], iteration_bounds = array<i64: 1, 1>, scalar_prefetch = 0 : i64, scratch_operands = 1 : i64, tpu.core_type = #tpu.core_type<tc>, window_params = [{transform_indices = @transform_0, window_bounds = array<i64: 16, 256>}, {transform_indices = @transform_1, window_bounds = array<i64: 256, 512>}, {transform_indices = @transform_2, window_bounds = array<i64: 256, 512>}, {transform_indices = @transform_3, window_bounds = array<i64: 512, 256>}, {transform_indices = @transform_4, window_bounds = array<i64: 16, 256>}]} {
    %c0_i32 = arith.constant 0 : i32
    %0 = arith.cmpi eq, %arg1, %c0_i32 : i32
    %1 = arith.extui %0 : i1 to i32
    %c0_i32_0 = arith.constant 0 : i32
    %2 = arith.cmpi ne, %1, %c0_i32_0 : i32
    scf.if %2 {
      %cst_17 = arith.constant 0.000000e+00 : f32
      %24 = vector.broadcast %cst_17 : f32 to vector<16x256xf32>
      %c0_18 = arith.constant 0 : index
      %c0_19 = arith.constant 0 : index
      %25 = vector.load %arg7[%c0_18, %c0_19] : memref<16x256xf32, #tpu.memory_space<vmem>>, vector<16x256xf32>
      tpu.vector_store %arg7[%c0_18, %c0_19], %24 {strides = array<i32>} : memref<16x256xf32, #tpu.memory_space<vmem>>, vector<16x256xf32>,
    } else {
    }
    %c0 = arith.constant 0 : index
    %c0_1 = arith.constant 0 : index
    %3 = vector.load %arg2[%c0, %c0_1] : memref<16x256xbf16, #tpu.memory_space<vmem>>, vector<16x256xbf16>
    %c0_2 = arith.constant 0 : index
    %c0_3 = arith.constant 0 : index
    %4 = vector.load %arg3[%c0_2, %c0_3] : memref<256x512xbf16, #tpu.memory_space<vmem>>, vector<256x512xbf16>
    %cst = arith.constant dense<0.000000e+00> : vector<16x512xf32>
    %5 = tpu.matmul %3, %4, %cst {dimension_numbers = #tpu.dot_dimension_numbers<[1], [0], [0], [1], [0, 0, 1, 1], [], []>} : vector<16x256xbf16>, vector<256x512xbf16>, vector<16x512xf32> -> vector<16x512xf32>
    %c0_4 = arith.constant 0 : index
    %c0_5 = arith.constant 0 : index
    %6 = vector.load %arg4[%c0_4, %c0_5] : memref<256x512xbf16, #tpu.memory_space<vmem>>, vector<256x512xbf16>
    %cst_6 = arith.constant dense<0.000000e+00> : vector<16x512xf32>
    %7 = tpu.matmul %3, %6, %cst_6 {dimension_numbers = #tpu.dot_dimension_numbers<[1], [0], [0], [1], [0, 0, 1, 1], [], []>} : vector<16x256xbf16>, vector<256x512xbf16>, vector<16x512xf32> -> vector<16x512xf32>
    %8 = arith.negf %5 : vector<16x512xf32>
    %9 = math.exp %8 : vector<16x512xf32>
    %cst_7 = arith.constant 1.000000e+00 : f32
    %10 = vector.broadcast %cst_7 : f32 to vector<16x512xf32>
    %11 = arith.addf %10, %9 : vector<16x512xf32>
    %12 = arith.divf %10, %11 : vector<16x512xf32>
    %13 = arith.mulf %5, %12 : vector<16x512xf32>
    %14 = arith.mulf %13, %7 : vector<16x512xf32>
    %c0_8 = arith.constant 0 : index
    %c0_9 = arith.constant 0 : index
    %15 = vector.load %arg7[%c0_8, %c0_9] : memref<16x256xf32, #tpu.memory_space<vmem>>, vector<16x256xf32>
    %16 = arith.truncf %14 : vector<16x512xf32> to vector<16x512xbf16>
    %c0_10 = arith.constant 0 : index
    %c0_11 = arith.constant 0 : index
    %17 = vector.load %arg5[%c0_10, %c0_11] : memref<512x256xbf16, #tpu.memory_space<vmem>>, vector<512x256xbf16>
    %cst_12 = arith.constant dense<0.000000e+00> : vector<16x256xf32>
    %18 = tpu.matmul %16, %17, %cst_12 {dimension_numbers = #tpu.dot_dimension_numbers<[1], [0], [0], [1], [0, 0, 1, 1], [], []>} : vector<16x512xbf16>, vector<512x256xbf16>, vector<16x256xf32> -> vector<16x256xf32>
    %19 = arith.addf %15, %18 : vector<16x256xf32>
    %c0_13 = arith.constant 0 : index
    %c0_14 = arith.constant 0 : index
    %20 = vector.load %arg7[%c0_13, %c0_14] : memref<16x256xf32, #tpu.memory_space<vmem>>, vector<16x256xf32>
    tpu.vector_store %arg7[%c0_13, %c0_14], %19 {strides = array<i32>} : memref<16x256xf32, #tpu.memory_space<vmem>>, vector<16x256xf32>,
    %c0_i32_15 = arith.constant 0 : i32
    %21 = arith.cmpi eq, %arg1, %c0_i32_15 : i32
    %22 = arith.extui %21 : i1 to i32
    %c0_i32_16 = arith.constant 0 : i32
    %23 = arith.cmpi ne, %22, %c0_i32_16 : i32
    scf.if %23 {
      %c0_17 = arith.constant 0 : index
      %c0_18 = arith.constant 0 : index
      %24 = vector.load %arg7[%c0_17, %c0_18] : memref<16x256xf32, #tpu.memory_space<vmem>>, vector<16x256xf32>
      %25 = arith.truncf %24 : vector<16x256xf32> to vector<16x256xbf16>
      %c0_19 = arith.constant 0 : index
      %c0_20 = arith.constant 0 : index
      %26 = vector.load %arg6[%c0_19, %c0_20] : memref<16x256xbf16, #tpu.memory_space<vmem>>, vector<16x256xbf16>
      tpu.vector_store %arg6[%c0_19, %c0_20], %25 {strides = array<i32>} : memref<16x256xbf16, #tpu.memory_space<vmem>>, vector<16x256xbf16>,
    } else {
    }
    return
  }
  func.func @transform_0(%arg0: i32, %arg1: i32) -> (i32, i32) {
    %c0_i32 = arith.constant 0 : i32
    %c0_i32_0 = arith.constant 0 : i32
    return %arg0, %c0_i32 : i32, i32
  }
  func.func @transform_1(%arg0: i32, %arg1: i32) -> (i32, i32) {
    %c0_i32 = arith.constant 0 : i32
    %c0_i32_0 = arith.constant 0 : i32
    return %c0_i32, %arg1 : i32, i32
  }
  func.func @transform_2(%arg0: i32, %arg1: i32) -> (i32, i32) {
    %c0_i32 = arith.constant 0 : i32
    %c0_i32_0 = arith.constant 0 : i32
    return %c0_i32, %arg1 : i32, i32
  }
  func.func @transform_3(%arg0: i32, %arg1: i32) -> (i32, i32) {
    %c0_i32 = arith.constant 0 : i32
    %c0_i32_0 = arith.constant 0 : i32
    return %arg1, %c0_i32 : i32, i32
  }
  func.func @transform_4(%arg0: i32, %arg1: i32) -> (i32, i32) {
    %c0_i32 = arith.constant 0 : i32
    %c0_i32_0 = arith.constant 0 : i32
    return %arg0, %c0_i32 : i32, i32
  }
}

</mosaic_0001>

<llo_original>
// kernel: tpu_custom_call.1
$region0: #{tpu_custom_call.1}
  #allocation0 [shape = 'u32[]', space=smem, size = 0x4, offset = 0x4, fixed_abs, tag = 'smem constant byte address 0x4 - core index']
  #allocation1 [shape = 'u32[144,128]{1,0:T(1,128)}', space=vmem, size = 0x12000, scoped, tag = 'internal scratch']
  #allocation2 [shape = 'f32[16,256]{1,0:T(8,128)}', space=vmem, size = 0x4000, scoped, tag = 'scratch operand']
  %s0 = inlined_call_operand.hbm [shape: bf16[16,256], index: 0, kind: input, shape index: {}]
  %s1 = inlined_call_operand.hbm [shape: bf16[256,512], index: 1, kind: input, shape index: {}]
  %s2 = inlined_call_operand.hbm [shape: bf16[256,512], index: 2, kind: input, shape index: {}]
  %s3 = inlined_call_operand.hbm [shape: bf16[512,256], index: 3, kind: input, shape index: {}]
  %s4 = inlined_call_operand.hbm [shape: bf16[16,256], index: 4, kind: output, shape index: {}]
  %s5 = sld [smem:[#allocation0]]
  $region50: #{tpu_custom_call.1} parent=0
    _
  %s7 = ssub.s32 1, %s5
  %s8 = scalar_select 0, %s7, %s5
  $region1: #{tpu_custom_call.1} parent=0
    #allocation3 [shape = 'u8[8192]{0}', space=vmem, size = 0x2000, scoped, tag = 'input window, operand 0, single buffered']
    #allocation4 [shape = 's32[1]{0}', space=sflag, size = 0x4, scoped, tag = 'scoped memory for tpu_custom_call.1']
    #allocation5 [shape = 's32[1]{0}', space=sflag, size = 0x4, scoped, tag = 'scoped memory for tpu_custom_call.1']
    #allocation6 [shape = 'u8[262144]{0}', space=vmem, size = 0x40000, scoped, tag = 'input window, operand 1, single buffered']
    #allocation7 [shape = 's32[1]{0}', space=sflag, size = 0x4, scoped, tag = 'scoped memory for tpu_custom_call.1']
    #allocation8 [shape = 'u8[262144]{0}', space=vmem, size = 0x40000, scoped, tag = 'input window, operand 2, single buffered']
    #allocation9 [shape = 'u8[262144]{0}', space=vmem, size = 0x40000, scoped, tag = 'input window, operand 3, single buffered']
    #allocation10 [shape = 's32[1]{0}', space=sflag, size = 0x4, scoped, tag = 'scoped memory for tpu_custom_call.1']
    #allocation11 [shape = 'u8[8192]{0}', space=vmem, size = 0x2000, scoped, tag = 'output window, operand 0, single buffered']
    %9 = vsyncpa [#allocation4], 0
    %10 = vsyncpa [#allocation7], 0
    %11 = vsyncpa [#allocation10], 0
    %12 = vsyncpa [#allocation5], 0
    // Predicated region
    $region2: #{tpu_custom_call.1} parent=1 // pred_check
      _
    $region3: #{tpu_custom_call.1} parent=1 // pred_check_branch
      %14 = sbr.rel (0) target = $region5
    $region4: #{tpu_custom_call.1} parent=1 // pred_region
      %s16 = ssub.s32 256, 256
      %17 = vsyncadd [#allocation4], %s16
      %s18 = sshll.u32 [#allocation3], 4
      %s19 = int_to_ptr.vmem [resolvable:$true] %s18
      %24 = dma.hbm_to_vmem [thread:$0]  %s0, 256, %s19, [#allocation4], 128, 128, 8
    $region5: #{tpu_custom_call.1} parent=1 // pred_fallthru
      _
    // Predicated region
    $region6: #{tpu_custom_call.1} parent=1 // pred_check
      _
    $region7: #{tpu_custom_call.1} parent=1 // pred_check_branch
      %26 = sbr.rel (0) target = $region9
    $region8: #{tpu_custom_call.1} parent=1 // pred_region
      %s28 = ssub.s32 8192, 8192
      %29 = vsyncadd [#allocation7], %s28
      %s30 = sshll.u32 [#allocation6], 4
      %s31 = int_to_ptr.vmem [resolvable:$true] %s30
      %36 = dma.hbm_to_vmem [thread:$0]  %s1, 8192, %s31, [#allocation7], 256, 256, 16
    $region9: #{tpu_custom_call.1} parent=1 // pred_fallthru
      _
    // Predicated region
    $region10: #{tpu_custom_call.1} parent=1 // pred_check
      _
    $region11: #{tpu_custom_call.1} parent=1 // pred_check_branch
      %38 = sbr.rel (0) target = $region13
    $region12: #{tpu_custom_call.1} parent=1 // pred_region
      %s40 = ssub.s32 8192, 8192
      %41 = vsyncadd [#allocation7], %s40
      %s42 = sshll.u32 [#allocation8], 4
      %s43 = int_to_ptr.vmem [resolvable:$true] %s42
      %48 = dma.hbm_to_vmem [thread:$0]  %s2, 8192, %s43, [#allocation7], 256, 256, 16
    $region13: #{tpu_custom_call.1} parent=1 // pred_fallthru
      _
    // Predicated region
    $region14: #{tpu_custom_call.1} parent=1 // pred_check
      _
    $region15: #{tpu_custom_call.1} parent=1 // pred_check_branch
      %50 = sbr.rel (0) target = $region17
    $region16: #{tpu_custom_call.1} parent=1 // pred_region
      %s52 = ssub.s32 8192, 8192
      %53 = vsyncadd [#allocation10], %s52
      %s54 = sshll.u32 [#allocation9], 4
      %s55 = int_to_ptr.vmem [resolvable:$true] %s54
      %60 = dma.hbm_to_vmem [thread:$0]  %s3, 8192, %s55, [#allocation10], 128, 128, 8
    $region17: #{tpu_custom_call.1} parent=1 // pred_fallthru
      _
    // Predicated region
    $region18: #{tpu_custom_call.1} parent=1 // pred_check
      _
    $region19: #{tpu_custom_call.1} parent=1 // pred_check_branch
      %62 = sbr.rel (0) target = $region21
    $region20: #{tpu_custom_call.1} parent=1 // pred_region
      %63 = dma.done [#allocation4], 256
    $region21: #{tpu_custom_call.1} parent=1 // pred_fallthru
      _
    // Predicated region
    $region22: #{tpu_custom_call.1} parent=1 // pred_check
      _
    $region23: #{tpu_custom_call.1} parent=1 // pred_check_branch
      %65 = sbr.rel (0) target = $region25
    $region24: #{tpu_custom_call.1} parent=1 // pred_region
      %66 = dma.done [#allocation7], 8192
    $region25: #{tpu_custom_call.1} parent=1 // pred_fallthru
      _
    // Predicated region
    $region26: #{tpu_custom_call.1} parent=1 // pred_check
      _
    $region27: #{tpu_custom_call.1} parent=1 // pred_check_branch
      %68 = sbr.rel (0) target = $region29
    $region28: #{tpu_custom_call.1} parent=1 // pred_region
      %69 = dma.done [#allocation7], 8192
    $region29: #{tpu_custom_call.1} parent=1 // pred_fallthru
      _
    // Predicated region
    $region30: #{tpu_custom_call.1} parent=1 // pred_check
      _
    $region31: #{tpu_custom_call.1} parent=1 // pred_check_branch
      %71 = sbr.rel (0) target = $region33
    $region32: #{tpu_custom_call.1} parent=1 // pred_region
      %72 = dma.done [#allocation10], 8192
    $region33: #{tpu_custom_call.1} parent=1 // pred_fallthru
      _
    %p73 = scmp.eq.s32.totalorder 0, 0
    // Predicated region
    $region34: #{tpu_custom_call.1} parent=1 // pred_check
      %p74 = pneg %p73
    $region35: #{tpu_custom_call.1} parent=1 // pred_check_branch
      %76 = sbr.rel (%p74) target = $region37
    $region36: #{tpu_custom_call.1} parent=1 // pred_region
      %77 = vst [vmem:[#allocation2] sm:$0xff] 0.0
      %78 = vst [vmem:[#allocation2 + $0x8] sm:$0xff] 0.0
      %79 = vst [vmem:[#allocation2 + $0x10] sm:$0xff] 0.0
      %80 = vst [vmem:[#allocation2 + $0x18] sm:$0xff] 0.0
    $region37: #{tpu_custom_call.1} parent=1 // pred_fallthru
      _
    %v81 = vld [vmem:[#allocation3] sm:$0xff]
    %v82 = vld [vmem:[#allocation3 + $0x8] sm:$0xff]
    %v83 = vld [vmem:[#allocation6] sm:$0xff]
    %v84 = vld [vmem:[#allocation6 + $0x8] sm:$0xff]
    %v85 = vld [vmem:[#allocation6 + $0x10] sm:$0xff]
    %v86 = vld [vmem:[#allocation6 + $0x18] sm:$0xff]
    %v87 = vld [vmem:[#allocation6 + $0x20] sm:$0xff]
    %v88 = vld [vmem:[#allocation6 + $0x28] sm:$0xff]
    %v89 = vld [vmem:[#allocation6 + $0x30] sm:$0xff]
    %v90 = vld [vmem:[#allocation6 + $0x38] sm:$0xff]
    %v91 = vld [vmem:[#allocation6 + $0x40] sm:$0xff]
    %v92 = vld [vmem:[#allocation6 + $0x48] sm:$0xff]
    %v93 = vld [vmem:[#allocation6 + $0x50] sm:$0xff]
    %v94 = vld [vmem:[#allocation6 + $0x58] sm:$0xff]
    %v95 = vld [vmem:[#allocation6 + $0x60] sm:$0xff]
    %v96 = vld [vmem:[#allocation6 + $0x68] sm:$0xff]
    %v97 = vld [vmem:[#allocation6 + $0x70] sm:$0xff]
    %v98 = vld [vmem:[#allocation6 + $0x78] sm:$0xff]
    %v99 = vld [vmem:[#allocation6 + $0x80] sm:$0xff]
    %v100 = vld [vmem:[#allocation6 + $0x88] sm:$0xff]
    %v101 = vld [vmem:[#allocation6 + $0x90] sm:$0xff]
    %v102 = vld [vmem:[#allocation6 + $0x98] sm:$0xff]
    %v103 = vld [vmem:[#allocation6 + $0xa0] sm:$0xff]
    %v104 = vld [vmem:[#allocation6 + $0xa8] sm:$0xff]
    %v105 = vld [vmem:[#allocation6 + $0xb0] sm:$0xff]
    %v106 = vld [vmem:[#allocation6 + $0xb8] sm:$0xff]
    %v107 = vld [vmem:[#allocation6 + $0xc0] sm:$0xff]
    %v108 = vld [vmem:[#allocation6 + $0xc8] sm:$0xff]
    %v109 = vld [vmem:[#allocation6 + $0xd0] sm:$0xff]
    %v110 = vld [vmem:[#allocation6 + $0xd8] sm:$0xff]
    %v111 = vld [vmem:[#allocation6 + $0xe0] sm:$0xff]
    %v112 = vld [vmem:[#allocation6 + $0xe8] sm:$0xff]
    %v113 = vld [vmem:[#allocation6 + $0xf0] sm:$0xff]
    %v114 = vld [vmem:[#allocation6 + $0xf8] sm:$0xff]
    %v115 = vld [vmem:[#allocation6 + $0x100] sm:$0xff]
    %v116 = vld [vmem:[#allocation6 + $0x108] sm:$0xff]
    %v117 = vld [vmem:[#allocation6 + $0x110] sm:$0xff]
    %v118 = vld [vmem:[#allocation6 + $0x118] sm:$0xff]
    %v119 = vld [vmem:[#allocation6 + $0x120] sm:$0xff]
    %v120 = vld [vmem:[#allocation6 + $0x128] sm:$0xff]
    %v121 = vld [vmem:[#allocation6 + $0x130] sm:$0xff]
    %v122 = vld [vmem:[#allocation6 + $0x138] sm:$0xff]
    %v123 = vld [vmem:[#allocation6 + $0x140] sm:$0xff]
    %v124 = vld [vmem:[#allocation6 + $0x148] sm:$0xff]
    %v125 = vld [vmem:[#allocation6 + $0x150] sm:$0xff]
    %v126 = vld [vmem:[#allocation6 + $0x158] sm:$0xff]
    %v127 = vld [vmem:[#allocation6 + $0x160] sm:$0xff]
    %v128 = vld [vmem:[#allocation6 + $0x168] sm:$0xff]
    %v129 = vld [vmem:[#allocation6 + $0x170] sm:$0xff]
    %v130 = vld [vmem:[#allocation6 + $0x178] sm:$0xff]
    %v131 = vld [vmem:[#allocation6 + $0x180] sm:$0xff]
    %v132 = vld [vmem:[#allocation6 + $0x188] sm:$0xff]
    %v133 = vld [vmem:[#allocation6 + $0x190] sm:$0xff]
    %v134 = vld [vmem:[#allocation6 + $0x198] sm:$0xff]
    %v135 = vld [vmem:[#allocation6 + $0x1a0] sm:$0xff]
    %v136 = vld [vmem:[#allocation6 + $0x1a8] sm:$0xff]
    %v137 = vld [vmem:[#allocation6 + $0x1b0] sm:$0xff]
    %v138 = vld [vmem:[#allocation6 + $0x1b8] sm:$0xff]
    %v139 = vld [vmem:[#allocation6 + $0x1c0] sm:$0xff]
    %v140 = vld [vmem:[#allocation6 + $0x1c8] sm:$0xff]
    %v141 = vld [vmem:[#allocation6 + $0x1d0] sm:$0xff]
    %v142 = vld [vmem:[#allocation6 + $0x1d8] sm:$0xff]
    %v143 = vld [vmem:[#allocation6 + $0x1e0] sm:$0xff]
    %v144 = vld [vmem:[#allocation6 + $0x1e8] sm:$0xff]
    %v145 = vld [vmem:[#allocation6 + $0x1f0] sm:$0xff]
    %v146 = vld [vmem:[#allocation6 + $0x1f8] sm:$0xff]
    %v149 = vunpack.c.l.b16 %v81
    %v150 = vunpack.c.h.b16 %v81
    %v151 = vunpack.c.l.b16 %v82
    %v152 = vunpack.c.h.b16 %v82
    %v153 = vpack.c.b16 %v151, %v149
    %v154 = vpack.c.b16 %v152, %v150
    %v221 = vunpack.c.l.b16 %v83
    %v222 = vunpack.c.h.b16 %v83
    %v223 = vunpack.c.l.b16 %v84
    %v224 = vunpack.c.h.b16 %v84
    %v225 = vunpack.c.l.b16 %v85
    %v226 = vunpack.c.h.b16 %v85
    %v227 = vunpack.c.l.b16 %v86
    %v228 = vunpack.c.h.b16 %v86
    %v229 = vunpack.c.l.b16 %v87
    %v230 = vunpack.c.h.b16 %v87
    %v231 = vunpack.c.l.b16 %v88
    %v232 = vunpack.c.h.b16 %v88
    %v233 = vunpack.c.l.b16 %v89
    %v234 = vunpack.c.h.b16 %v89
    %v235 = vunpack.c.l.b16 %v90
    %v236 = vunpack.c.h.b16 %v90
    %v237 = vunpack.c.l.b16 %v91
    %v238 = vunpack.c.h.b16 %v91
    %v239 = vunpack.c.l.b16 %v92
    %v240 = vunpack.c.h.b16 %v92
    %v241 = vunpack.c.l.b16 %v93
    %v242 = vunpack.c.h.b16 %v93
    %v243 = vunpack.c.l.b16 %v94
    %v244 = vunpack.c.h.b16 %v94
    %v245 = vunpack.c.l.b16 %v95
    %v246 = vunpack.c.h.b16 %v95
    %v247 = vunpack.c.l.b16 %v96
    %v248 = vunpack.c.h.b16 %v96
    %v249 = vunpack.c.l.b16 %v97
    %v250 = vunpack.c.h.b16 %v97
    %v251 = vunpack.c.l.b16 %v98
    %v252 = vunpack.c.h.b16 %v98
    %v253 = vunpack.c.l.b16 %v99
    %v254 = vunpack.c.h.b16 %v99
    %v255 = vunpack.c.l.b16 %v100
    %v256 = vunpack.c.h.b16 %v100
    %v257 = vunpack.c.l.b16 %v101
    %v258 = vunpack.c.h.b16 %v101
    %v259 = vunpack.c.l.b16 %v102
    %v260 = vunpack.c.h.b16 %v102
    %v261 = vunpack.c.l.b16 %v103
    %v262 = vunpack.c.h.b16 %v103
    %v263 = vunpack.c.l.b16 %v104
    %v264 = vunpack.c.h.b16 %v104
    %v265 = vunpack.c.l.b16 %v105
    %v266 = vunpack.c.h.b16 %v105
    %v267 = vunpack.c.l.b16 %v106
    %v268 = vunpack.c.h.b16 %v106
    %v269 = vunpack.c.l.b16 %v107
    %v270 = vunpack.c.h.b16 %v107
    %v271 = vunpack.c.l.b16 %v108
    %v272 = vunpack.c.h.b16 %v108
    %v273 = vunpack.c.l.b16 %v109
    %v274 = vunpack.c.h.b16 %v109
    %v275 = vunpack.c.l.b16 %v110
    %v276 = vunpack.c.h.b16 %v110
    %v277 = vunpack.c.l.b16 %v111
    %v278 = vunpack.c.h.b16 %v111
    %v279 = vunpack.c.l.b16 %v112
    %v280 = vunpack.c.h.b16 %v112
    %v281 = vunpack.c.l.b16 %v113
    %v282 = vunpack.c.h.b16 %v113
    %v283 = vunpack.c.l.b16 %v114
    %v284 = vunpack.c.h.b16 %v114
    %v285 = vunpack.c.l.b16 %v115
    %v286 = vunpack.c.h.b16 %v115
    %v287 = vunpack.c.l.b16 %v116
    %v288 = vunpack.c.h.b16 %v116
    %v289 = vunpack.c.l.b16 %v117
    %v290 = vunpack.c.h.b16 %v117
    %v291 = vunpack.c.l.b16 %v118
    %v292 = vunpack.c.h.b16 %v118
    %v293 = vunpack.c.l.b16 %v119
    %v294 = vunpack.c.h.b16 %v119
    %v295 = vunpack.c.l.b16 %v120
    %v296 = vunpack.c.h.b16 %v120
    %v297 = vunpack.c.l.b16 %v121
    %v298 = vunpack.c.h.b16 %v121
    %v299 = vunpack.c.l.b16 %v122
    %v300 = vunpack.c.h.b16 %v122
    %v301 = vunpack.c.l.b16 %v123
    %v302 = vunpack.c.h.b16 %v123
    %v303 = vunpack.c.l.b16 %v124
    %v304 = vunpack.c.h.b16 %v124
    %v305 = vunpack.c.l.b16 %v125
    %v306 = vunpack.c.h.b16 %v125
    %v307 = vunpack.c.l.b16 %v126
    %v308 = vunpack.c.h.b16 %v126
    %v309 = vunpack.c.l.b16 %v127
    %v310 = vunpack.c.h.b16 %v127
    %v311 = vunpack.c.l.b16 %v128
    %v312 = vunpack.c.h.b16 %v128
    %v313 = vunpack.c.l.b16 %v129
    %v314 = vunpack.c.h.b16 %v129
    %v315 = vunpack.c.l.b16 %v130
    %v316 = vunpack.c.h.b16 %v130
    %v317 = vunpack.c.l.b16 %v131
    %v318 = vunpack.c.h.b16 %v131
    %v319 = vunpack.c.l.b16 %v132
    %v320 = vunpack.c.h.b16 %v132
    %v321 = vunpack.c.l.b16 %v133
    %v322 = vunpack.c.h.b16 %v133
    %v323 = vunpack.c.l.b16 %v134
    %v324 = vunpack.c.h.b16 %v134
    %v325 = vunpack.c.l.b16 %v135
    %v326 = vunpack.c.h.b16 %v135
    %v327 = vunpack.c.l.b16 %v136
    %v328 = vunpack.c.h.b16 %v136
    %v329 = vunpack.c.l.b16 %v137
    %v330 = vunpack.c.h.b16 %v137
    %v331 = vunpack.c.l.b16 %v138
    %v332 = vunpack.c.h.b16 %v138
    %v333 = vunpack.c.l.b16 %v139
    %v334 = vunpack.c.h.b16 %v139
    %v335 = vunpack.c.l.b16 %v140
    %v336 = vunpack.c.h.b16 %v140
    %v337 = vunpack.c.l.b16 %v141
    %v338 = vunpack.c.h.b16 %v141
    %v339 = vunpack.c.l.b16 %v142
    %v340 = vunpack.c.h.b16 %v142
    %v341 = vunpack.c.l.b16 %v143
    %v342 = vunpack.c.h.b16 %v143
    %v343 = vunpack.c.l.b16 %v144
    %v344 = vunpack.c.h.b16 %v144
    %v345 = vunpack.c.l.b16 %v145
    %v346 = vunpack.c.h.b16 %v145
    %v347 = vunpack.c.l.b16 %v146
    %v348 = vunpack.c.h.b16 %v146
    %v349 = vpack.c.b16 %v225, %v221
    %v350 = vpack.c.b16 %v226, %v222
    %v351 = vpack.c.b16 %v227, %v223
    %v352 = vpack.c.b16 %v228, %v224
    %v353 = vpack.c.b16 %v233, %v229
    %v354 = vpack.c.b16 %v234, %v230
    %v355 = vpack.c.b16 %v235, %v231
    %v356 = vpack.c.b16 %v236, %v232
    %v357 = vpack.c.b16 %v241, %v237
    %v358 = vpack.c.b16 %v242, %v238
    %v359 = vpack.c.b16 %v243, %v239
    %v360 = vpack.c.b16 %v244, %v240
    %v361 = vpack.c.b16 %v249, %v245
    %v362 = vpack.c.b16 %v250, %v246
    %v363 = vpack.c.b16 %v251, %v247
    %v364 = vpack.c.b16 %v252, %v248
    %v365 = vpack.c.b16 %v257, %v253
    %v366 = vpack.c.b16 %v258, %v254
    %v367 = vpack.c.b16 %v259, %v255
    %v368 = vpack.c.b16 %v260, %v256
    %v369 = vpack.c.b16 %v265, %v261
    %v370 = vpack.c.b16 %v266, %v262
    %v371 = vpack.c.b16 %v267, %v263
    %v372 = vpack.c.b16 %v268, %v264
    %v373 = vpack.c.b16 %v273, %v269
    %v374 = vpack.c.b16 %v274, %v270
    %v375 = vpack.c.b16 %v275, %v271
    %v376 = vpack.c.b16 %v276, %v272
    %v377 = vpack.c.b16 %v281, %v277
    %v378 = vpack.c.b16 %v282, %v278
    %v379 = vpack.c.b16 %v283, %v279
    %v380 = vpack.c.b16 %v284, %v280
    %v381 = vpack.c.b16 %v289, %v285
    %v382 = vpack.c.b16 %v290, %v286
    %v383 = vpack.c.b16 %v291, %v287
    %v384 = vpack.c.b16 %v292, %v288
    %v385 = vpack.c.b16 %v297, %v293
    %v386 = vpack.c.b16 %v298, %v294
    %v387 = vpack.c.b16 %v299, %v295
    %v388 = vpack.c.b16 %v300, %v296
    %v389 = vpack.c.b16 %v305, %v301
    %v390 = vpack.c.b16 %v306, %v302
    %v391 = vpack.c.b16 %v307, %v303
    %v392 = vpack.c.b16 %v308, %v304
    %v393 = vpack.c.b16 %v313, %v309
    %v394 = vpack.c.b16 %v314, %v310
    %v395 = vpack.c.b16 %v315, %v311
    %v396 = vpack.c.b16 %v316, %v312
    %v397 = vpack.c.b16 %v321, %v317
    %v398 = vpack.c.b16 %v322, %v318
    %v399 = vpack.c.b16 %v323, %v319
    %v400 = vpack.c.b16 %v324, %v320
    %v401 = vpack.c.b16 %v329, %v325
    %v402 = vpack.c.b16 %v330, %v326
    %v403 = vpack.c.b16 %v331, %v327
    %v404 = vpack.c.b16 %v332, %v328
    %v405 = vpack.c.b16 %v337, %v333
    %v406 = vpack.c.b16 %v338, %v334
    %v407 = vpack.c.b16 %v339, %v335
    %v408 = vpack.c.b16 %v340, %v336
    %v409 = vpack.c.b16 %v345, %v341
    %v410 = vpack.c.b16 %v346, %v342
    %v411 = vpack.c.b16 %v347, %v343
    %v412 = vpack.c.b16 %v348, %v344
    %477 = vmatprep.subr.bf16.mxu0 %v350
    %478 = vmatpush1.bf16.msra.mxu0 %v349
    %479 = vmatprep.subr.bf16.mxu0 %v354
    %480 = vmatpush1.bf16.msra.mxu0 %v353
    %481 = vmatprep.subr.bf16.mxu0 %v358
    %482 = vmatpush1.bf16.msra.mxu0 %v357
    %483 = vmatprep.subr.bf16.mxu0 %v362
    %484 = vmatpush1.bf16.msra.mxu0 %v361
    %485 = vmatprep.subr.bf16.mxu0 %v366
    %486 = vmatpush1.bf16.msra.mxu0 %v365
    %487 = vmatprep.subr.bf16.mxu0 %v370
    %488 = vmatpush1.bf16.msra.mxu0 %v369
    %489 = vmatprep.subr.bf16.mxu0 %v374
    %490 = vmatpush1.bf16.msra.mxu0 %v373
    %491 = vmatprep.subr.bf16.mxu0 %v378
    %492 = vmatpush1.bf16.msra.mxu0 %v377
    %493 = vmatprep.subr.bf16.mxu0 %v382
    %494 = vmatpush1.bf16.msra.mxu0 %v381
    %495 = vmatprep.subr.bf16.mxu0 %v386
    %496 = vmatpush1.bf16.msra.mxu0 %v385
    %497 = vmatprep.subr.bf16.mxu0 %v390
    %498 = vmatpush1.bf16.msra.mxu0 %v389
    %499 = vmatprep.subr.bf16.mxu0 %v394
    %500 = vmatpush1.bf16.msra.mxu0 %v393
    %501 = vmatprep.subr.bf16.mxu0 %v398
    %502 = vmatpush1.bf16.msra.mxu0 %v397
    %503 = vmatprep.subr.bf16.mxu0 %v402
    %504 = vmatpush1.bf16.msra.mxu0 %v401
    %505 = vmatprep.subr.bf16.mxu0 %v406
    %506 = vmatpush1.bf16.msra.mxu0 %v405
    %507 = vmatprep.subr.bf16.mxu0 %v410
    %508 = vmatpush1.bf16.msra.mxu0 %v409
    %509 = vmatprep.mubr.bf16.mxu0 %v154
    %510 = vmatmul.mubr.bf16.gmra.mrb[0].mxu0 %v153
    %v511 = vpop.f32.mrb[0].mxu0
    %v512 = vadd.f32 0.0, %v511
    %v513 = vpop.f32.mrb[0].mxu0
    %v514 = vadd.f32 0.0, %v513
    %v515 = vpop.f32.mrb[0].mxu0
    %v516 = vadd.f32 0.0, %v515
    %v517 = vpop.f32.mrb[0].mxu0
    %v518 = vadd.f32 0.0, %v517
    %519 = vdwg.mxu0
    %520 = vmatprep.subr.bf16.mxu0 %v352
    %521 = vmatpush1.bf16.msra.mxu0 %v351
    %522 = vmatprep.subr.bf16.mxu0 %v356
    %523 = vmatpush1.bf16.msra.mxu0 %v355
    %524 = vmatprep.subr.bf16.mxu0 %v360
    %525 = vmatpush1.bf16.msra.mxu0 %v359
    %526 = vmatprep.subr.bf16.mxu0 %v364
    %527 = vmatpush1.bf16.msra.mxu0 %v363
    %528 = vmatprep.subr.bf16.mxu0 %v368
    %529 = vmatpush1.bf16.msra.mxu0 %v367
    %530 = vmatprep.subr.bf16.mxu0 %v372
    %531 = vmatpush1.bf16.msra.mxu0 %v371
    %532 = vmatprep.subr.bf16.mxu0 %v376
    %533 = vmatpush1.bf16.msra.mxu0 %v375
    %534 = vmatprep.subr.bf16.mxu0 %v380
    %535 = vmatpush1.bf16.msra.mxu0 %v379
    %536 = vmatprep.subr.bf16.mxu0 %v384
    %537 = vmatpush1.bf16.msra.mxu0 %v383
    %538 = vmatprep.subr.bf16.mxu0 %v388
    %539 = vmatpush1.bf16.msra.mxu0 %v387
    %540 = vmatprep.subr.bf16.mxu0 %v392
    %541 = vmatpush1.bf16.msra.mxu0 %v391
    %542 = vmatprep.subr.bf16.mxu0 %v396
    %543 = vmatpush1.bf16.msra.mxu0 %v395
    %544 = vmatprep.subr.bf16.mxu0 %v400
    %545 = vmatpush1.bf16.msra.mxu0 %v399
    %546 = vmatprep.subr.bf16.mxu0 %v404
    %547 = vmatpush1.bf16.msra.mxu0 %v403
    %548 = vmatprep.subr.bf16.mxu0 %v408
    %549 = vmatpush1.bf16.msra.mxu0 %v407
    %550 = vmatprep.subr.bf16.mxu0 %v412
    %551 = vmatpush1.bf16.msra.mxu0 %v411
    %552 = vmatprep.mubr.bf16.mxu0 %v154
    %553 = vmatmul.mubr.bf16.gmra.mrb[0].mxu0 %v153
    %v554 = vpop.f32.mrb[0].mxu0
    %v555 = vadd.f32 0.0, %v554
    %v556 = vpop.f32.mrb[0].mxu0
    %v557 = vadd.f32 0.0, %v556
    %v558 = vpop.f32.mrb[0].mxu0
    %v559 = vadd.f32 0.0, %v558
    %v560 = vpop.f32.mrb[0].mxu0
    %v561 = vadd.f32 0.0, %v560
    %562 = vdwg.mxu0
    %v563 = vld [vmem:[#allocation8] sm:$0xff]
    %v564 = vld [vmem:[#allocation8 + $0x8] sm:$0xff]
    %v565 = vld [vmem:[#allocation8 + $0x10] sm:$0xff]
    %v566 = vld [vmem:[#allocation8 + $0x18] sm:$0xff]
    %v567 = vld [vmem:[#allocation8 + $0x20] sm:$0xff]
    %v568 = vld [vmem:[#allocation8 + $0x28] sm:$0xff]
    %v569 = vld [vmem:[#allocation8 + $0x30] sm:$0xff]
    %v570 = vld [vmem:[#allocation8 + $0x38] sm:$0xff]
    %v571 = vld [vmem:[#allocation8 + $0x40] sm:$0xff]
    %v572 = vld [vmem:[#allocation8 + $0x48] sm:$0xff]
    %v573 = vld [vmem:[#allocation8 + $0x50] sm:$0xff]
    %v574 = vld [vmem:[#allocation8 + $0x58] sm:$0xff]
    %v575 = vld [vmem:[#allocation8 + $0x60] sm:$0xff]
    %v576 = vld [vmem:[#allocation8 + $0x68] sm:$0xff]
    %v577 = vld [vmem:[#allocation8 + $0x70] sm:$0xff]
    %v578 = vld [vmem:[#allocation8 + $0x78] sm:$0xff]
    %v579 = vld [vmem:[#allocation8 + $0x80] sm:$0xff]
    %v580 = vld [vmem:[#allocation8 + $0x88] sm:$0xff]
    %v581 = vld [vmem:[#allocation8 + $0x90] sm:$0xff]
    %v582 = vld [vmem:[#allocation8 + $0x98] sm:$0xff]
    %v583 = vld [vmem:[#allocation8 + $0xa0] sm:$0xff]
    %v584 = vld [vmem:[#allocation8 + $0xa8] sm:$0xff]
    %v585 = vld [vmem:[#allocation8 + $0xb0] sm:$0xff]
    %v586 = vld [vmem:[#allocation8 + $0xb8] sm:$0xff]
    %v587 = vld [vmem:[#allocation8 + $0xc0] sm:$0xff]
    %v588 = vld [vmem:[#allocation8 + $0xc8] sm:$0xff]
    %v589 = vld [vmem:[#allocation8 + $0xd0] sm:$0xff]
    %v590 = vld [vmem:[#allocation8 + $0xd8] sm:$0xff]
    %v591 = vld [vmem:[#allocation8 + $0xe0] sm:$0xff]
    %v592 = vld [vmem:[#allocation8 + $0xe8] sm:$0xff]
    %v593 = vld [vmem:[#allocation8 + $0xf0] sm:$0xff]
    %v594 = vld [vmem:[#allocation8 + $0xf8] sm:$0xff]
    %v595 = vld [vmem:[#allocation8 + $0x100] sm:$0xff]
    %v596 = vld [vmem:[#allocation8 + $0x108] sm:$0xff]
    %v597 = vld [vmem:[#allocation8 + $0x110] sm:$0xff]
    %v598 = vld [vmem:[#allocation8 + $0x118] sm:$0xff]
    %v599 = vld [vmem:[#allocation8 + $0x120] sm:$0xff]
    %v600 = vld [vmem:[#allocation8 + $0x128] sm:$0xff]
    %v601 = vld [vmem:[#allocation8 + $0x130] sm:$0xff]
    %v602 = vld [vmem:[#allocation8 + $0x138] sm:$0xff]
    %v603 = vld [vmem:[#allocation8 + $0x140] sm:$0xff]
    %v604 = vld [vmem:[#allocation8 + $0x148] sm:$0xff]
    %v605 = vld [vmem:[#allocation8 + $0x150] sm:$0xff]
    %v606 = vld [vmem:[#allocation8 + $0x158] sm:$0xff]
    %v607 = vld [vmem:[#allocation8 + $0x160] sm:$0xff]
    %v608 = vld [vmem:[#allocation8 + $0x168] sm:$0xff]
    %v609 = vld [vmem:[#allocation8 + $0x170] sm:$0xff]
    %v610 = vld [vmem:[#allocation8 + $0x178] sm:$0xff]
    %v611 = vld [vmem:[#allocation8 + $0x180] sm:$0xff]
    %v612 = vld [vmem:[#allocation8 + $0x188] sm:$0xff]
    %v613 = vld [vmem:[#allocation8 + $0x190] sm:$0xff]
    %v614 = vld [vmem:[#allocation8 + $0x198] sm:$0xff]
    %v615 = vld [vmem:[#allocation8 + $0x1a0] sm:$0xff]
    %v616 = vld [vmem:[#allocation8 + $0x1a8] sm:$0xff]
    %v617 = vld [vmem:[#allocation8 + $0x1b0] sm:$0xff]
    %v618 = vld [vmem:[#allocation8 + $0x1b8] sm:$0xff]
    %v619 = vld [vmem:[#allocation8 + $0x1c0] sm:$0xff]
    %v620 = vld [vmem:[#allocation8 + $0x1c8] sm:$0xff]
    %v621 = vld [vmem:[#allocation8 + $0x1d0] sm:$0xff]
    %v622 = vld [vmem:[#allocation8 + $0x1d8] sm:$0xff]
    %v623 = vld [vmem:[#allocation8 + $0x1e0] sm:$0xff]
    %v624 = vld [vmem:[#allocation8 + $0x1e8] sm:$0xff]
    %v625 = vld [vmem:[#allocation8 + $0x1f0] sm:$0xff]
    %v626 = vld [vmem:[#allocation8 + $0x1f8] sm:$0xff]
    %v691 = vunpack.c.l.b16 %v563
    %v692 = vunpack.c.h.b16 %v563
    %v693 = vunpack.c.l.b16 %v564
    %v694 = vunpack.c.h.b16 %v564
    %v695 = vunpack.c.l.b16 %v565
    %v696 = vunpack.c.h.b16 %v565
    %v697 = vunpack.c.l.b16 %v566
    %v698 = vunpack.c.h.b16 %v566
    %v699 = vunpack.c.l.b16 %v567
    %v700 = vunpack.c.h.b16 %v567
    %v701 = vunpack.c.l.b16 %v568
    %v702 = vunpack.c.h.b16 %v568
    %v703 = vunpack.c.l.b16 %v569
    %v704 = vunpack.c.h.b16 %v569
    %v705 = vunpack.c.l.b16 %v570
    %v706 = vunpack.c.h.b16 %v570
    %v707 = vunpack.c.l.b16 %v571
    %v708 = vunpack.c.h.b16 %v571
    %v709 = vunpack.c.l.b16 %v572
    %v710 = vunpack.c.h.b16 %v572
    %v711 = vunpack.c.l.b16 %v573
    %v712 = vunpack.c.h.b16 %v573
    %v713 = vunpack.c.l.b16 %v574
    %v714 = vunpack.c.h.b16 %v574
    %v715 = vunpack.c.l.b16 %v575
    %v716 = vunpack.c.h.b16 %v575
    %v717 = vunpack.c.l.b16 %v576
    %v718 = vunpack.c.h.b16 %v576
    %v719 = vunpack.c.l.b16 %v577
    %v720 = vunpack.c.h.b16 %v577
    %v721 = vunpack.c.l.b16 %v578
    %v722 = vunpack.c.h.b16 %v578
    %v723 = vunpack.c.l.b16 %v579
    %v724 = vunpack.c.h.b16 %v579
    %v725 = vunpack.c.l.b16 %v580
    %v726 = vunpack.c.h.b16 %v580
    %v727 = vunpack.c.l.b16 %v581
    %v728 = vunpack.c.h.b16 %v581
    %v729 = vunpack.c.l.b16 %v582
    %v730 = vunpack.c.h.b16 %v582
    %v731 = vunpack.c.l.b16 %v583
    %v732 = vunpack.c.h.b16 %v583
    %v733 = vunpack.c.l.b16 %v584
    %v734 = vunpack.c.h.b16 %v584
    %v735 = vunpack.c.l.b16 %v585
    %v736 = vunpack.c.h.b16 %v585
    %v737 = vunpack.c.l.b16 %v586
    %v738 = vunpack.c.h.b16 %v586
    %v739 = vunpack.c.l.b16 %v587
    %v740 = vunpack.c.h.b16 %v587
    %v741 = vunpack.c.l.b16 %v588
    %v742 = vunpack.c.h.b16 %v588
    %v743 = vunpack.c.l.b16 %v589
    %v744 = vunpack.c.h.b16 %v589
    %v745 = vunpack.c.l.b16 %v590
    %v746 = vunpack.c.h.b16 %v590
    %v747 = vunpack.c.l.b16 %v591
    %v748 = vunpack.c.h.b16 %v591
    %v749 = vunpack.c.l.b16 %v592
    %v750 = vunpack.c.h.b16 %v592
    %v751 = vunpack.c.l.b16 %v593
    %v752 = vunpack.c.h.b16 %v593
    %v753 = vunpack.c.l.b16 %v594
    %v754 = vunpack.c.h.b16 %v594
    %v755 = vunpack.c.l.b16 %v595
    %v756 = vunpack.c.h.b16 %v595
    %v757 = vunpack.c.l.b16 %v596
    %v758 = vunpack.c.h.b16 %v596
    %v759 = vunpack.c.l.b16 %v597
    %v760 = vunpack.c.h.b16 %v597
    %v761 = vunpack.c.l.b16 %v598
    %v762 = vunpack.c.h.b16 %v598
    %v763 = vunpack.c.l.b16 %v599
    %v764 = vunpack.c.h.b16 %v599
    %v765 = vunpack.c.l.b16 %v600
    %v766 = vunpack.c.h.b16 %v600
    %v767 = vunpack.c.l.b16 %v601
    %v768 = vunpack.c.h.b16 %v601
    %v769 = vunpack.c.l.b16 %v602
    %v770 = vunpack.c.h.b16 %v602
    %v771 = vunpack.c.l.b16 %v603
    %v772 = vunpack.c.h.b16 %v603
    %v773 = vunpack.c.l.b16 %v604
    %v774 = vunpack.c.h.b16 %v604
    %v775 = vunpack.c.l.b16 %v605
    %v776 = vunpack.c.h.b16 %v605
    %v777 = vunpack.c.l.b16 %v606
    %v778 = vunpack.c.h.b16 %v606
    %v779 = vunpack.c.l.b16 %v607
    %v780 = vunpack.c.h.b16 %v607
    %v781 = vunpack.c.l.b16 %v608
    %v782 = vunpack.c.h.b16 %v608
    %v783 = vunpack.c.l.b16 %v609
    %v784 = vunpack.c.h.b16 %v609
    %v785 = vunpack.c.l.b16 %v610
    %v786 = vunpack.c.h.b16 %v610
    %v787 = vunpack.c.l.b16 %v611
    %v788 = vunpack.c.h.b16 %v611
    %v789 = vunpack.c.l.b16 %v612
    %v790 = vunpack.c.h.b16 %v612
    %v791 = vunpack.c.l.b16 %v613
    %v792 = vunpack.c.h.b16 %v613
    %v793 = vunpack.c.l.b16 %v614
    %v794 = vunpack.c.h.b16 %v614
    %v795 = vunpack.c.l.b16 %v615
    %v796 = vunpack.c.h.b16 %v615
    %v797 = vunpack.c.l.b16 %v616
    %v798 = vunpack.c.h.b16 %v616
    %v799 = vunpack.c.l.b16 %v617
    %v800 = vunpack.c.h.b16 %v617
    %v801 = vunpack.c.l.b16 %v618
    %v802 = vunpack.c.h.b16 %v618
    %v803 = vunpack.c.l.b16 %v619
    %v804 = vunpack.c.h.b16 %v619
    %v805 = vunpack.c.l.b16 %v620
    %v806 = vunpack.c.h.b16 %v620
    %v807 = vunpack.c.l.b16 %v621
    %v808 = vunpack.c.h.b16 %v621
    %v809 = vunpack.c.l.b16 %v622
    %v810 = vunpack.c.h.b16 %v622
    %v811 = vunpack.c.l.b16 %v623
    %v812 = vunpack.c.h.b16 %v623
    %v813 = vunpack.c.l.b16 %v624
    %v814 = vunpack.c.h.b16 %v624
    %v815 = vunpack.c.l.b16 %v625
    %v816 = vunpack.c.h.b16 %v625
    %v817 = vunpack.c.l.b16 %v626
    %v818 = vunpack.c.h.b16 %v626
    %v819 = vpack.c.b16 %v695, %v691
    %v820 = vpack.c.b16 %v696, %v692
    %v821 = vpack.c.b16 %v697, %v693
    %v822 = vpack.c.b16 %v698, %v694
    %v823 = vpack.c.b16 %v703, %v699
    %v824 = vpack.c.b16 %v704, %v700
    %v825 = vpack.c.b16 %v705, %v701
    %v826 = vpack.c.b16 %v706, %v702
    %v827 = vpack.c.b16 %v711, %v707
    %v828 = vpack.c.b16 %v712, %v708
    %v829 = vpack.c.b16 %v713, %v709
    %v830 = vpack.c.b16 %v714, %v710
    %v831 = vpack.c.b16 %v719, %v715
    %v832 = vpack.c.b16 %v720, %v716
    %v833 = vpack.c.b16 %v721, %v717
    %v834 = vpack.c.b16 %v722, %v718
    %v835 = vpack.c.b16 %v727, %v723
    %v836 = vpack.c.b16 %v728, %v724
    %v837 = vpack.c.b16 %v729, %v725
    %v838 = vpack.c.b16 %v730, %v726
    %v839 = vpack.c.b16 %v735, %v731
    %v840 = vpack.c.b16 %v736, %v732
    %v841 = vpack.c.b16 %v737, %v733
    %v842 = vpack.c.b16 %v738, %v734
    %v843 = vpack.c.b16 %v743, %v739
    %v844 = vpack.c.b16 %v744, %v740
    %v845 = vpack.c.b16 %v745, %v741
    %v846 = vpack.c.b16 %v746, %v742
    %v847 = vpack.c.b16 %v751, %v747
    %v848 = vpack.c.b16 %v752, %v748
    %v849 = vpack.c.b16 %v753, %v749
    %v850 = vpack.c.b16 %v754, %v750
    %v851 = vpack.c.b16 %v759, %v755
    %v852 = vpack.c.b16 %v760, %v756
    %v853 = vpack.c.b16 %v761, %v757
    %v854 = vpack.c.b16 %v762, %v758
    %v855 = vpack.c.b16 %v767, %v763
    %v856 = vpack.c.b16 %v768, %v764
    %v857 = vpack.c.b16 %v769, %v765
    %v858 = vpack.c.b16 %v770, %v766
    %v859 = vpack.c.b16 %v775, %v771
    %v860 = vpack.c.b16 %v776, %v772
    %v861 = vpack.c.b16 %v777, %v773
    %v862 = vpack.c.b16 %v778, %v774
    %v863 = vpack.c.b16 %v783, %v779
    %v864 = vpack.c.b16 %v784, %v780
    %v865 = vpack.c.b16 %v785, %v781
    %v866 = vpack.c.b16 %v786, %v782
    %v867 = vpack.c.b16 %v791, %v787
    %v868 = vpack.c.b16 %v792, %v788
    %v869 = vpack.c.b16 %v793, %v789
    %v870 = vpack.c.b16 %v794, %v790
    %v871 = vpack.c.b16 %v799, %v795
    %v872 = vpack.c.b16 %v800, %v796
    %v873 = vpack.c.b16 %v801, %v797
    %v874 = vpack.c.b16 %v802, %v798
    %v875 = vpack.c.b16 %v807, %v803
    %v876 = vpack.c.b16 %v808, %v804
    %v877 = vpack.c.b16 %v809, %v805
    %v878 = vpack.c.b16 %v810, %v806
    %v879 = vpack.c.b16 %v815, %v811
    %v880 = vpack.c.b16 %v816, %v812
    %v881 = vpack.c.b16 %v817, %v813
    %v882 = vpack.c.b16 %v818, %v814
    %947 = vmatprep.subr.bf16.mxu0 %v820
    %948 = vmatpush1.bf16.msra.mxu0 %v819
    %949 = vmatprep.subr.bf16.mxu0 %v824
    %950 = vmatpush1.bf16.msra.mxu0 %v823
    %951 = vmatprep.subr.bf16.mxu0 %v828
    %952 = vmatpush1.bf16.msra.mxu0 %v827
    %953 = vmatprep.subr.bf16.mxu0 %v832
    %954 = vmatpush1.bf16.msra.mxu0 %v831
    %955 = vmatprep.subr.bf16.mxu0 %v836
    %956 = vmatpush1.bf16.msra.mxu0 %v835
    %957 = vmatprep.subr.bf16.mxu0 %v840
    %958 = vmatpush1.bf16.msra.mxu0 %v839
    %959 = vmatprep.subr.bf16.mxu0 %v844
    %960 = vmatpush1.bf16.msra.mxu0 %v843
    %961 = vmatprep.subr.bf16.mxu0 %v848
    %962 = vmatpush1.bf16.msra.mxu0 %v847
    %963 = vmatprep.subr.bf16.mxu0 %v852
    %964 = vmatpush1.bf16.msra.mxu0 %v851
    %965 = vmatprep.subr.bf16.mxu0 %v856
    %966 = vmatpush1.bf16.msra.mxu0 %v855
    %967 = vmatprep.subr.bf16.mxu0 %v860
    %968 = vmatpush1.bf16.msra.mxu0 %v859
    %969 = vmatprep.subr.bf16.mxu0 %v864
    %970 = vmatpush1.bf16.msra.mxu0 %v863
    %971 = vmatprep.subr.bf16.mxu0 %v868
    %972 = vmatpush1.bf16.msra.mxu0 %v867
    %973 = vmatprep.subr.bf16.mxu0 %v872
    %974 = vmatpush1.bf16.msra.mxu0 %v871
    %975 = vmatprep.subr.bf16.mxu0 %v876
    %976 = vmatpush1.bf16.msra.mxu0 %v875
    %977 = vmatprep.subr.bf16.mxu0 %v880
    %978 = vmatpush1.bf16.msra.mxu0 %v879
    %979 = vmatprep.mubr.bf16.mxu0 %v154
    %980 = vmatmul.mubr.bf16.gmra.mrb[0].mxu0 %v153
    %v981 = vpop.f32.mrb[0].mxu0
    %v982 = vadd.f32 0.0, %v981
    %v983 = vpop.f32.mrb[0].mxu0
    %v984 = vadd.f32 0.0, %v983
    %v985 = vpop.f32.mrb[0].mxu0
    %v986 = vadd.f32 0.0, %v985
    %v987 = vpop.f32.mrb[0].mxu0
    %v988 = vadd.f32 0.0, %v987
    %989 = vdwg.mxu0
    %990 = vmatprep.subr.bf16.mxu0 %v822
    %991 = vmatpush1.bf16.msra.mxu0 %v821
    %992 = vmatprep.subr.bf16.mxu0 %v826
    %993 = vmatpush1.bf16.msra.mxu0 %v825
    %994 = vmatprep.subr.bf16.mxu0 %v830
    %995 = vmatpush1.bf16.msra.mxu0 %v829
    %996 = vmatprep.subr.bf16.mxu0 %v834
    %997 = vmatpush1.bf16.msra.mxu0 %v833
    %998 = vmatprep.subr.bf16.mxu0 %v838
    %999 = vmatpush1.bf16.msra.mxu0 %v837
    %1000 = vmatprep.subr.bf16.mxu0 %v842
    %1001 = vmatpush1.bf16.msra.mxu0 %v841
    %1002 = vmatprep.subr.bf16.mxu0 %v846
    %1003 = vmatpush1.bf16.msra.mxu0 %v845
    %1004 = vmatprep.subr.bf16.mxu0 %v850
    %1005 = vmatpush1.bf16.msra.mxu0 %v849
    %1006 = vmatprep.subr.bf16.mxu0 %v854
    %1007 = vmatpush1.bf16.msra.mxu0 %v853
    %1008 = vmatprep.subr.bf16.mxu0 %v858
    %1009 = vmatpush1.bf16.msra.mxu0 %v857
    %1010 = vmatprep.subr.bf16.mxu0 %v862
    %1011 = vmatpush1.bf16.msra.mxu0 %v861
    %1012 = vmatprep.subr.bf16.mxu0 %v866
    %1013 = vmatpush1.bf16.msra.mxu0 %v865
    %1014 = vmatprep.subr.bf16.mxu0 %v870
    %1015 = vmatpush1.bf16.msra.mxu0 %v869
    %1016 = vmatprep.subr.bf16.mxu0 %v874
    %1017 = vmatpush1.bf16.msra.mxu0 %v873
    %1018 = vmatprep.subr.bf16.mxu0 %v878
    %1019 = vmatpush1.bf16.msra.mxu0 %v877
    %1020 = vmatprep.subr.bf16.mxu0 %v882
    %1021 = vmatpush1.bf16.msra.mxu0 %v881
    %1022 = vmatprep.mubr.bf16.mxu0 %v154
    %1023 = vmatmul.mubr.bf16.gmra.mrb[0].mxu0 %v153
    %v1024 = vpop.f32.mrb[0].mxu0
    %v1025 = vadd.f32 0.0, %v1024
    %v1026 = vpop.f32.mrb[0].mxu0
    %v1027 = vadd.f32 0.0, %v1026
    %v1028 = vpop.f32.mrb[0].mxu0
    %v1029 = vadd.f32 0.0, %v1028
    %v1030 = vpop.f32.mrb[0].mxu0
    %v1031 = vadd.f32 0.0, %v1030
    %1032 = vdwg.mxu0
    %v1033 = vxor.u32 %v512, 2147483648
    %v1034 = vxor.u32 %v514, 2147483648
    %v1035 = vxor.u32 %v555, 2147483648
    %v1036 = vxor.u32 %v557, 2147483648
    %v1037 = vxor.u32 %v516, 2147483648
    %v1038 = vxor.u32 %v518, 2147483648
    %v1039 = vxor.u32 %v559, 2147483648
    %v1040 = vxor.u32 %v561, 2147483648
    %v1041 = vmul.f32 %v1033, 1.442695
    %v1042 = vpow.pop %v1041
    %v1043 = vmul.f32 %v1034, 1.442695
    %v1044 = vpow.pop %v1043
    %v1045 = vmul.f32 %v1035, 1.442695
    %v1046 = vpow.pop %v1045
    %v1047 = vmul.f32 %v1036, 1.442695
    %v1048 = vpow.pop %v1047
    %v1049 = vmul.f32 %v1037, 1.442695
    %v1050 = vpow.pop %v1049
    %v1051 = vmul.f32 %v1038, 1.442695
    %v1052 = vpow.pop %v1051
    %v1053 = vmul.f32 %v1039, 1.442695
    %v1054 = vpow.pop %v1053
    %v1055 = vmul.f32 %v1040, 1.442695
    %v1056 = vpow.pop %v1055
    %v1057 = vadd.f32 %v1042, 1.0
    %v1058 = vadd.f32 %v1044, 1.0
    %v1059 = vadd.f32 %v1046, 1.0
    %v1060 = vadd.f32 %v1048, 1.0
    %v1061 = vadd.f32 %v1050, 1.0
    %v1062 = vadd.f32 %v1052, 1.0
    %v1063 = vadd.f32 %v1054, 1.0
    %v1064 = vadd.f32 %v1056, 1.0
    %v1065 = vrcp.pop %v1057
    %v1066 = vmul.f32 1.0, %v1065
    %v1067 = vrcp.pop %v1058
    %v1068 = vmul.f32 1.0, %v1067
    %v1069 = vrcp.pop %v1059
    %v1070 = vmul.f32 1.0, %v1069
    %v1071 = vrcp.pop %v1060
    %v1072 = vmul.f32 1.0, %v1071
    %v1073 = vrcp.pop %v1061
    %v1074 = vmul.f32 1.0, %v1073
    %v1075 = vrcp.pop %v1062
    %v1076 = vmul.f32 1.0, %v1075
    %v1077 = vrcp.pop %v1063
    %v1078 = vmul.f32 1.0, %v1077
    %v1079 = vrcp.pop %v1064
    %v1080 = vmul.f32 1.0, %v1079
    %v1081 = vmul.f32 %v512, %v1066
    %v1082 = vmul.f32 %v514, %v1068
    %v1083 = vmul.f32 %v555, %v1070
    %v1084 = vmul.f32 %v557, %v1072
    %v1085 = vmul.f32 %v516, %v1074
    %v1086 = vmul.f32 %v518, %v1076
    %v1087 = vmul.f32 %v559, %v1078
    %v1088 = vmul.f32 %v561, %v1080
    %v1089 = vmul.f32 %v1081, %v982
    %v1090 = vmul.f32 %v1082, %v984
    %v1091 = vmul.f32 %v1083, %v1025
    %v1092 = vmul.f32 %v1084, %v1027
    %v1093 = vmul.f32 %v1085, %v986
    %v1094 = vmul.f32 %v1086, %v988
    %v1095 = vmul.f32 %v1087, %v1029
    %v1096 = vmul.f32 %v1088, %v1031
    %v1097 = vld [vmem:[#allocation2] sm:$0xff]
    %v1098 = vld [vmem:[#allocation2 + $0x8] sm:$0xff]
    %v1099 = vld [vmem:[#allocation2 + $0x10] sm:$0xff]
    %v1100 = vld [vmem:[#allocation2 + $0x18] sm:$0xff]
    %v1101 = vpack.c.bf16 %v1093, %v1089
    %v1102 = vpack.c.bf16 %v1094, %v1090
    %v1103 = vpack.c.bf16 %v1095, %v1091
    %v1104 = vpack.c.bf16 %v1096, %v1092
    %v1105 = vld [vmem:[#allocation9] sm:$0xff]
    %v1106 = vld [vmem:[#allocation9 + $0x8] sm:$0xff]
    %v1107 = vld [vmem:[#allocation9 + $0x10] sm:$0xff]
    %v1108 = vld [vmem:[#allocation9 + $0x18] sm:$0xff]
    %v1109 = vld [vmem:[#allocation9 + $0x20] sm:$0xff]
    %v1110 = vld [vmem:[#allocation9 + $0x28] sm:$0xff]
    %v1111 = vld [vmem:[#allocation9 + $0x30] sm:$0xff]
    %v1112 = vld [vmem:[#allocation9 + $0x38] sm:$0xff]
    %v1113 = vld [vmem:[#allocation9 + $0x40] sm:$0xff]
    %v1114 = vld [vmem:[#allocation9 + $0x48] sm:$0xff]
    %v1115 = vld [vmem:[#allocation9 + $0x50] sm:$0xff]
    %v1116 = vld [vmem:[#allocation9 + $0x58] sm:$0xff]
    %v1117 = vld [vmem:[#allocation9 + $0x60] sm:$0xff]
    %v1118 = vld [vmem:[#allocation9 + $0x68] sm:$0xff]
    %v1119 = vld [vmem:[#allocation9 + $0x70] sm:$0xff]
    %v1120 = vld [vmem:[#allocation9 + $0x78] sm:$0xff]
    %v1121 = vld [vmem:[#allocation9 + $0x80] sm:$0xff]
    %v1122 = vld [vmem:[#allocation9 + $0x88] sm:$0xff]
    %v1123 = vld [vmem:[#allocation9 + $0x90] sm:$0xff]
    %v1124 = vld [vmem:[#allocation9 + $0x98] sm:$0xff]
    %v1125 = vld [vmem:[#allocation9 + $0xa0] sm:$0xff]
    %v1126 = vld [vmem:[#allocation9 + $0xa8] sm:$0xff]
    %v1127 = vld [vmem:[#allocation9 + $0xb0] sm:$0xff]
    %v1128 = vld [vmem:[#allocation9 + $0xb8] sm:$0xff]
    %v1129 = vld [vmem:[#allocation9 + $0xc0] sm:$0xff]
    %v1130 = vld [vmem:[#allocation9 + $0xc8] sm:$0xff]
    %v1131 = vld [vmem:[#allocation9 + $0xd0] sm:$0xff]
    %v1132 = vld [vmem:[#allocation9 + $0xd8] sm:$0xff]
    %v1133 = vld [vmem:[#allocation9 + $0xe0] sm:$0xff]
    %v1134 = vld [vmem:[#allocation9 + $0xe8] sm:$0xff]
    %v1135 = vld [vmem:[#allocation9 + $0xf0] sm:$0xff]
    %v1136 = vld [vmem:[#allocation9 + $0xf8] sm:$0xff]
    %v1137 = vld [vmem:[#allocation9 + $0x100] sm:$0xff]
    %v1138 = vld [vmem:[#allocation9 + $0x108] sm:$0xff]
    %v1139 = vld [vmem:[#allocation9 + $0x110] sm:$0xff]
    %v1140 = vld [vmem:[#allocation9 + $0x118] sm:$0xff]
    %v1141 = vld [vmem:[#allocation9 + $0x120] sm:$0xff]
    %v1142 = vld [vmem:[#allocation9 + $0x128] sm:$0xff]
    %v1143 = vld [vmem:[#allocation9 + $0x130] sm:$0xff]
    %v1144 = vld [vmem:[#allocation9 + $0x138] sm:$0xff]
    %v1145 = vld [vmem:[#allocation9 + $0x140] sm:$0xff]
    %v1146 = vld [vmem:[#allocation9 + $0x148] sm:$0xff]
    %v1147 = vld [vmem:[#allocation9 + $0x150] sm:$0xff]
    %v1148 = vld [vmem:[#allocation9 + $0x158] sm:$0xff]
    %v1149 = vld [vmem:[#allocation9 + $0x160] sm:$0xff]
    %v1150 = vld [vmem:[#allocation9 + $0x168] sm:$0xff]
    %v1151 = vld [vmem:[#allocation9 + $0x170] sm:$0xff]
    %v1152 = vld [vmem:[#allocation9 + $0x178] sm:$0xff]
    %v1153 = vld [vmem:[#allocation9 + $0x180] sm:$0xff]
    %v1154 = vld [vmem:[#allocation9 + $0x188] sm:$0xff]
    %v1155 = vld [vmem:[#allocation9 + $0x190] sm:$0xff]
    %v1156 = vld [vmem:[#allocation9 + $0x198] sm:$0xff]
    %v1157 = vld [vmem:[#allocation9 + $0x1a0] sm:$0xff]
    %v1158 = vld [vmem:[#allocation9 + $0x1a8] sm:$0xff]
    %v1159 = vld [vmem:[#allocation9 + $0x1b0] sm:$0xff]
    %v1160 = vld [vmem:[#allocation9 + $0x1b8] sm:$0xff]
    %v1161 = vld [vmem:[#allocation9 + $0x1c0] sm:$0xff]
    %v1162 = vld [vmem:[#allocation9 + $0x1c8] sm:$0xff]
    %v1163 = vld [vmem:[#allocation9 + $0x1d0] sm:$0xff]
    %v1164 = vld [vmem:[#allocation9 + $0x1d8] sm:$0xff]
    %v1165 = vld [vmem:[#allocation9 + $0x1e0] sm:$0xff]
    %v1166 = vld [vmem:[#allocation9 + $0x1e8] sm:$0xff]
    %v1167 = vld [vmem:[#allocation9 + $0x1f0] sm:$0xff]
    %v1168 = vld [vmem:[#allocation9 + $0x1f8] sm:$0xff]
    %v1233 = vunpack.c.l.b16 %v1105
    %v1234 = vunpack.c.h.b16 %v1105
    %v1235 = vunpack.c.l.b16 %v1106
    %v1236 = vunpack.c.h.b16 %v1106
    %v1237 = vunpack.c.l.b16 %v1107
    %v1238 = vunpack.c.h.b16 %v1107
    %v1239 = vunpack.c.l.b16 %v1108
    %v1240 = vunpack.c.h.b16 %v1108
    %v1241 = vunpack.c.l.b16 %v1109
    %v1242 = vunpack.c.h.b16 %v1109
    %v1243 = vunpack.c.l.b16 %v1110
    %v1244 = vunpack.c.h.b16 %v1110
    %v1245 = vunpack.c.l.b16 %v1111
    %v1246 = vunpack.c.h.b16 %v1111
    %v1247 = vunpack.c.l.b16 %v1112
    %v1248 = vunpack.c.h.b16 %v1112
    %v1249 = vunpack.c.l.b16 %v1113
    %v1250 = vunpack.c.h.b16 %v1113
    %v1251 = vunpack.c.l.b16 %v1114
    %v1252 = vunpack.c.h.b16 %v1114
    %v1253 = vunpack.c.l.b16 %v1115
    %v1254 = vunpack.c.h.b16 %v1115
    %v1255 = vunpack.c.l.b16 %v1116
    %v1256 = vunpack.c.h.b16 %v1116
    %v1257 = vunpack.c.l.b16 %v1117
    %v1258 = vunpack.c.h.b16 %v1117
    %v1259 = vunpack.c.l.b16 %v1118
    %v1260 = vunpack.c.h.b16 %v1118
    %v1261 = vunpack.c.l.b16 %v1119
    %v1262 = vunpack.c.h.b16 %v1119
    %v1263 = vunpack.c.l.b16 %v1120
    %v1264 = vunpack.c.h.b16 %v1120
    %v1265 = vunpack.c.l.b16 %v1121
    %v1266 = vunpack.c.h.b16 %v1121
    %v1267 = vunpack.c.l.b16 %v1122
    %v1268 = vunpack.c.h.b16 %v1122
    %v1269 = vunpack.c.l.b16 %v1123
    %v1270 = vunpack.c.h.b16 %v1123
    %v1271 = vunpack.c.l.b16 %v1124
    %v1272 = vunpack.c.h.b16 %v1124
    %v1273 = vunpack.c.l.b16 %v1125
    %v1274 = vunpack.c.h.b16 %v1125
    %v1275 = vunpack.c.l.b16 %v1126
    %v1276 = vunpack.c.h.b16 %v1126
    %v1277 = vunpack.c.l.b16 %v1127
    %v1278 = vunpack.c.h.b16 %v1127
    %v1279 = vunpack.c.l.b16 %v1128
    %v1280 = vunpack.c.h.b16 %v1128
    %v1281 = vunpack.c.l.b16 %v1129
    %v1282 = vunpack.c.h.b16 %v1129
    %v1283 = vunpack.c.l.b16 %v1130
    %v1284 = vunpack.c.h.b16 %v1130
    %v1285 = vunpack.c.l.b16 %v1131
    %v1286 = vunpack.c.h.b16 %v1131
    %v1287 = vunpack.c.l.b16 %v1132
    %v1288 = vunpack.c.h.b16 %v1132
    %v1289 = vunpack.c.l.b16 %v1133
    %v1290 = vunpack.c.h.b16 %v1133
    %v1291 = vunpack.c.l.b16 %v1134
    %v1292 = vunpack.c.h.b16 %v1134
    %v1293 = vunpack.c.l.b16 %v1135
    %v1294 = vunpack.c.h.b16 %v1135
    %v1295 = vunpack.c.l.b16 %v1136
    %v1296 = vunpack.c.h.b16 %v1136
    %v1297 = vunpack.c.l.b16 %v1137
    %v1298 = vunpack.c.h.b16 %v1137
    %v1299 = vunpack.c.l.b16 %v1138
    %v1300 = vunpack.c.h.b16 %v1138
    %v1301 = vunpack.c.l.b16 %v1139
    %v1302 = vunpack.c.h.b16 %v1139
    %v1303 = vunpack.c.l.b16 %v1140
    %v1304 = vunpack.c.h.b16 %v1140
    %v1305 = vunpack.c.l.b16 %v1141
    %v1306 = vunpack.c.h.b16 %v1141
    %v1307 = vunpack.c.l.b16 %v1142
    %v1308 = vunpack.c.h.b16 %v1142
    %v1309 = vunpack.c.l.b16 %v1143
    %v1310 = vunpack.c.h.b16 %v1143
    %v1311 = vunpack.c.l.b16 %v1144
    %v1312 = vunpack.c.h.b16 %v1144
    %v1313 = vunpack.c.l.b16 %v1145
    %v1314 = vunpack.c.h.b16 %v1145
    %v1315 = vunpack.c.l.b16 %v1146
    %v1316 = vunpack.c.h.b16 %v1146
    %v1317 = vunpack.c.l.b16 %v1147
    %v1318 = vunpack.c.h.b16 %v1147
    %v1319 = vunpack.c.l.b16 %v1148
    %v1320 = vunpack.c.h.b16 %v1148
    %v1321 = vunpack.c.l.b16 %v1149
    %v1322 = vunpack.c.h.b16 %v1149
    %v1323 = vunpack.c.l.b16 %v1150
    %v1324 = vunpack.c.h.b16 %v1150
    %v1325 = vunpack.c.l.b16 %v1151
    %v1326 = vunpack.c.h.b16 %v1151
    %v1327 = vunpack.c.l.b16 %v1152
    %v1328 = vunpack.c.h.b16 %v1152
    %v1329 = vunpack.c.l.b16 %v1153
    %v1330 = vunpack.c.h.b16 %v1153
    %v1331 = vunpack.c.l.b16 %v1154
    %v1332 = vunpack.c.h.b16 %v1154
    %v1333 = vunpack.c.l.b16 %v1155
    %v1334 = vunpack.c.h.b16 %v1155
    %v1335 = vunpack.c.l.b16 %v1156
    %v1336 = vunpack.c.h.b16 %v1156
    %v1337 = vunpack.c.l.b16 %v1157
    %v1338 = vunpack.c.h.b16 %v1157
    %v1339 = vunpack.c.l.b16 %v1158
    %v1340 = vunpack.c.h.b16 %v1158
    %v1341 = vunpack.c.l.b16 %v1159
    %v1342 = vunpack.c.h.b16 %v1159
    %v1343 = vunpack.c.l.b16 %v1160
    %v1344 = vunpack.c.h.b16 %v1160
    %v1345 = vunpack.c.l.b16 %v1161
    %v1346 = vunpack.c.h.b16 %v1161
    %v1347 = vunpack.c.l.b16 %v1162
    %v1348 = vunpack.c.h.b16 %v1162
    %v1349 = vunpack.c.l.b16 %v1163
    %v1350 = vunpack.c.h.b16 %v1163
    %v1351 = vunpack.c.l.b16 %v1164
    %v1352 = vunpack.c.h.b16 %v1164
    %v1353 = vunpack.c.l.b16 %v1165
    %v1354 = vunpack.c.h.b16 %v1165
    %v1355 = vunpack.c.l.b16 %v1166
    %v1356 = vunpack.c.h.b16 %v1166
    %v1357 = vunpack.c.l.b16 %v1167
    %v1358 = vunpack.c.h.b16 %v1167
    %v1359 = vunpack.c.l.b16 %v1168
    %v1360 = vunpack.c.h.b16 %v1168
    %v1361 = vpack.c.b16 %v1235, %v1233
    %v1362 = vpack.c.b16 %v1236, %v1234
    %v1363 = vpack.c.b16 %v1239, %v1237
    %v1364 = vpack.c.b16 %v1240, %v1238
    %v1365 = vpack.c.b16 %v1243, %v1241
    %v1366 = vpack.c.b16 %v1244, %v1242
    %v1367 = vpack.c.b16 %v1247, %v1245
    %v1368 = vpack.c.b16 %v1248, %v1246
    %v1369 = vpack.c.b16 %v1251, %v1249
    %v1370 = vpack.c.b16 %v1252, %v1250
    %v1371 = vpack.c.b16 %v1255, %v1253
    %v1372 = vpack.c.b16 %v1256, %v1254
    %v1373 = vpack.c.b16 %v1259, %v1257
    %v1374 = vpack.c.b16 %v1260, %v1258
    %v1375 = vpack.c.b16 %v1263, %v1261
    %v1376 = vpack.c.b16 %v1264, %v1262
    %v1377 = vpack.c.b16 %v1267, %v1265
    %v1378 = vpack.c.b16 %v1268, %v1266
    %v1379 = vpack.c.b16 %v1271, %v1269
    %v1380 = vpack.c.b16 %v1272, %v1270
    %v1381 = vpack.c.b16 %v1275, %v1273
    %v1382 = vpack.c.b16 %v1276, %v1274
    %v1383 = vpack.c.b16 %v1279, %v1277
    %v1384 = vpack.c.b16 %v1280, %v1278
    %v1385 = vpack.c.b16 %v1283, %v1281
    %v1386 = vpack.c.b16 %v1284, %v1282
    %v1387 = vpack.c.b16 %v1287, %v1285
    %v1388 = vpack.c.b16 %v1288, %v1286
    %v1389 = vpack.c.b16 %v1291, %v1289
    %v1390 = vpack.c.b16 %v1292, %v1290
    %v1391 = vpack.c.b16 %v1295, %v1293
    %v1392 = vpack.c.b16 %v1296, %v1294
    %v1393 = vpack.c.b16 %v1299, %v1297
    %v1394 = vpack.c.b16 %v1300, %v1298
    %v1395 = vpack.c.b16 %v1303, %v1301
    %v1396 = vpack.c.b16 %v1304, %v1302
    %v1397 = vpack.c.b16 %v1307, %v1305
    %v1398 = vpack.c.b16 %v1308, %v1306
    %v1399 = vpack.c.b16 %v1311, %v1309
    %v1400 = vpack.c.b16 %v1312, %v1310
    %v1401 = vpack.c.b16 %v1315, %v1313
    %v1402 = vpack.c.b16 %v1316, %v1314
    %v1403 = vpack.c.b16 %v1319, %v1317
    %v1404 = vpack.c.b16 %v1320, %v1318
    %v1405 = vpack.c.b16 %v1323, %v1321
    %v1406 = vpack.c.b16 %v1324, %v1322
    %v1407 = vpack.c.b16 %v1327, %v1325
    %v1408 = vpack.c.b16 %v1328, %v1326
    %v1409 = vpack.c.b16 %v1331, %v1329
    %v1410 = vpack.c.b16 %v1332, %v1330
    %v1411 = vpack.c.b16 %v1335, %v1333
    %v1412 = vpack.c.b16 %v1336, %v1334
    %v1413 = vpack.c.b16 %v1339, %v1337
    %v1414 = vpack.c.b16 %v1340, %v1338
    %v1415 = vpack.c.b16 %v1343, %v1341
    %v1416 = vpack.c.b16 %v1344, %v1342
    %v1417 = vpack.c.b16 %v1347, %v1345
    %v1418 = vpack.c.b16 %v1348, %v1346
    %v1419 = vpack.c.b16 %v1351, %v1349
    %v1420 = vpack.c.b16 %v1352, %v1350
    %v1421 = vpack.c.b16 %v1355, %v1353
    %v1422 = vpack.c.b16 %v1356, %v1354
    %v1423 = vpack.c.b16 %v1359, %v1357
    %v1424 = vpack.c.b16 %v1360, %v1358
    %1489 = vmatprep.subr.bf16.mxu0 %v1362
    %1490 = vmatpush1.bf16.msra.mxu0 %v1361
    %1491 = vmatprep.subr.bf16.mxu0 %v1364
    %1492 = vmatpush1.bf16.msra.mxu0 %v1363
    %1493 = vmatprep.subr.bf16.mxu0 %v1366
    %1494 = vmatpush1.bf16.msra.mxu0 %v1365
    %1495 = vmatprep.subr.bf16.mxu0 %v1368
    %1496 = vmatpush1.bf16.msra.mxu0 %v1367
    %1497 = vmatprep.subr.bf16.mxu0 %v1370
    %1498 = vmatpush1.bf16.msra.mxu0 %v1369
    %1499 = vmatprep.subr.bf16.mxu0 %v1372
    %1500 = vmatpush1.bf16.msra.mxu0 %v1371
    %1501 = vmatprep.subr.bf16.mxu0 %v1374
    %1502 = vmatpush1.bf16.msra.mxu0 %v1373
    %1503 = vmatprep.subr.bf16.mxu0 %v1376
    %1504 = vmatpush1.bf16.msra.mxu0 %v1375
    %1505 = vmatprep.subr.bf16.mxu0 %v1378
    %1506 = vmatpush1.bf16.msra.mxu0 %v1377
    %1507 = vmatprep.subr.bf16.mxu0 %v1380
    %1508 = vmatpush1.bf16.msra.mxu0 %v1379
    %1509 = vmatprep.subr.bf16.mxu0 %v1382
    %1510 = vmatpush1.bf16.msra.mxu0 %v1381
    %1511 = vmatprep.subr.bf16.mxu0 %v1384
    %1512 = vmatpush1.bf16.msra.mxu0 %v1383
    %1513 = vmatprep.subr.bf16.mxu0 %v1386
    %1514 = vmatpush1.bf16.msra.mxu0 %v1385
    %1515 = vmatprep.subr.bf16.mxu0 %v1388
    %1516 = vmatpush1.bf16.msra.mxu0 %v1387
    %1517 = vmatprep.subr.bf16.mxu0 %v1390
    %1518 = vmatpush1.bf16.msra.mxu0 %v1389
    %1519 = vmatprep.subr.bf16.mxu0 %v1392
    %1520 = vmatpush1.bf16.msra.mxu0 %v1391
    %1521 = vmatprep.mubr.bf16.mxu0 %v1102
    %1522 = vmatmul.mubr.bf16.gmra.mrb[0].mxu0 %v1101
    %v1523 = vpop.f32.mrb[0].mxu0
    %v1524 = vadd.f32 0.0, %v1523
    %v1525 = vpop.f32.mrb[0].mxu0
    %v1526 = vadd.f32 0.0, %v1525
    %v1527 = vpop.f32.mrb[0].mxu0
    %v1528 = vadd.f32 0.0, %v1527
    %v1529 = vpop.f32.mrb[0].mxu0
    %v1530 = vadd.f32 0.0, %v1529
    %1531 = vdwg.mxu0
    %1532 = vmatprep.subr.bf16.mxu0 %v1394
    %1533 = vmatpush1.bf16.msra.mxu0 %v1393
    %1534 = vmatprep.subr.bf16.mxu0 %v1396
    %1535 = vmatpush1.bf16.msra.mxu0 %v1395
    %1536 = vmatprep.subr.bf16.mxu0 %v1398
    %1537 = vmatpush1.bf16.msra.mxu0 %v1397
    %1538 = vmatprep.subr.bf16.mxu0 %v1400
    %1539 = vmatpush1.bf16.msra.mxu0 %v1399
    %1540 = vmatprep.subr.bf16.mxu0 %v1402
    %1541 = vmatpush1.bf16.msra.mxu0 %v1401
    %1542 = vmatprep.subr.bf16.mxu0 %v1404
    %1543 = vmatpush1.bf16.msra.mxu0 %v1403
    %1544 = vmatprep.subr.bf16.mxu0 %v1406
    %1545 = vmatpush1.bf16.msra.mxu0 %v1405
    %1546 = vmatprep.subr.bf16.mxu0 %v1408
    %1547 = vmatpush1.bf16.msra.mxu0 %v1407
    %1548 = vmatprep.subr.bf16.mxu0 %v1410
    %1549 = vmatpush1.bf16.msra.mxu0 %v1409
    %1550 = vmatprep.subr.bf16.mxu0 %v1412
    %1551 = vmatpush1.bf16.msra.mxu0 %v1411
    %1552 = vmatprep.subr.bf16.mxu0 %v1414
    %1553 = vmatpush1.bf16.msra.mxu0 %v1413
    %1554 = vmatprep.subr.bf16.mxu0 %v1416
    %1555 = vmatpush1.bf16.msra.mxu0 %v1415
    %1556 = vmatprep.subr.bf16.mxu0 %v1418
    %1557 = vmatpush1.bf16.msra.mxu0 %v1417
    %1558 = vmatprep.subr.bf16.mxu0 %v1420
    %1559 = vmatpush1.bf16.msra.mxu0 %v1419
    %1560 = vmatprep.subr.bf16.mxu0 %v1422
    %1561 = vmatpush1.bf16.msra.mxu0 %v1421
    %1562 = vmatprep.subr.bf16.mxu0 %v1424
    %1563 = vmatpush1.bf16.msra.mxu0 %v1423
    %1564 = vmatprep.mubr.bf16.mxu0 %v1104
    %1565 = vmatmul.mubr.bf16.gmra.mrb[0].mxu0 %v1103
    %v1566 = vpop.f32.mrb[0].mxu0
    %v1567 = vadd.f32 %v1524, %v1566
    %v1568 = vpop.f32.mrb[0].mxu0
    %v1569 = vadd.f32 %v1526, %v1568
    %v1570 = vpop.f32.mrb[0].mxu0
    %v1571 = vadd.f32 %v1528, %v1570
    %v1572 = vpop.f32.mrb[0].mxu0
    %v1573 = vadd.f32 %v1530, %v1572
    %1574 = vdwg.mxu0
    %v1575 = vadd.f32 %v1097, %v1567
    %v1576 = vadd.f32 %v1098, %v1569
    %v1577 = vadd.f32 %v1099, %v1571
    %v1578 = vadd.f32 %v1100, %v1573
    %1579 = vst [vmem:[#allocation2] sm:$0xff] %v1575
    %1580 = vst [vmem:[#allocation2 + $0x8] sm:$0xff] %v1576
    %1581 = vst [vmem:[#allocation2 + $0x10] sm:$0xff] %v1577
    %1582 = vst [vmem:[#allocation2 + $0x18] sm:$0xff] %v1578
    // Predicated region
    $region38: #{tpu_custom_call.1} parent=1 // pred_check
      %p1583 = pneg %p73
    $region39: #{tpu_custom_call.1} parent=1 // pred_check_branch
      %1585 = sbr.rel (%p1583) target = $region41
    $region40: #{tpu_custom_call.1} parent=1 // pred_region
      %v1586 = vld [vmem:[#allocation2] sm:$0xff]
      %v1587 = vld [vmem:[#allocation2 + $0x8] sm:$0xff]
      %v1588 = vld [vmem:[#allocation2 + $0x10] sm:$0xff]
      %v1589 = vld [vmem:[#allocation2 + $0x18] sm:$0xff]
      %v1590 = vpack.c.bf16 %v1588, %v1586
      %v1591 = vpack.c.bf16 %v1589, %v1587
      %v1594 = vunpack.c.l.b16 %v1590
      %v1595 = vunpack.c.l.b16 %v1591
      %v1596 = vunpack.c.h.b16 %v1590
      %v1597 = vunpack.c.h.b16 %v1591
      %v1598 = vpack.c.b16 %v1595, %v1594
      %v1599 = vpack.c.b16 %v1597, %v1596
      %1602 = vst [vmem:[#allocation11] sm:$0xff] %v1598
      %1603 = vst [vmem:[#allocation11 + $0x8] sm:$0xff] %v1599
    $region41: #{tpu_custom_call.1} parent=1 // pred_fallthru
      _
    // Predicated region
    $region42: #{tpu_custom_call.1} parent=1 // pred_check
      _
    $region43: #{tpu_custom_call.1} parent=1 // pred_check_branch
      %1605 = sbr.rel (0) target = $region45
    $region44: #{tpu_custom_call.1} parent=1 // pred_region
      %s1607 = ssub.s32 256, 256
      %1608 = vsyncadd [#allocation5], %s1607
      %s1609 = sshll.u32 [#allocation11], 4
      %s1610 = int_to_ptr.vmem [resolvable:$true] %s1609
      %1615 = dma.vmem_to_hbm [thread:$0]  %s1610, 256, %s4, [#allocation5], 128, 128, 8
    $region45: #{tpu_custom_call.1} parent=1 // pred_fallthru
      _
    // Predicated region
    $region46: #{tpu_custom_call.1} parent=1 // pred_check
      _
    $region47: #{tpu_custom_call.1} parent=1 // pred_check_branch
      %1617 = sbr.rel (0) target = $region49
    $region48: #{tpu_custom_call.1} parent=1 // pred_region
      %1618 = dma.done [#allocation5], 256
    $region49: #{tpu_custom_call.1} parent=1 // pred_fallthru
      _
    %1619 = vsyncpa [#allocation4], 1
    %1620 = vsyncpa [#allocation7], 1
    %1621 = vsyncpa [#allocation10], 1
    %1622 = vsyncpa [#allocation5], 1

</llo_original>
